<compile_context>
chip_gen: v5e
topology: v5e:2x2
jax: 0.10.0
libtpu: 0.0.40
codegen_flags: <defaults>
</compile_context>

<pallas_src>
import functools
from typing import NamedTuple

import numpy as np
import jax
import jax.numpy as jnp
from jax.experimental import pallas as pl
from jax.experimental.pallas import tpu as pltpu

LANE = 128                     # vreg lane width -> hidden/output feature padding
SUBLANE_BF16 = 16              # bf16 sublane packing multiple
COMPUTE_DTYPE = jnp.bfloat16   # MXU input / streamed dtype (accumulation is f32)


def _round_up(x, m):
    return (x + m - 1) // m * m


def _elu_f32(v):
    # nn.ELU(alpha=1.0) in f32; clamp the exp arg so the discarded branch never infs.
    return jnp.where(v > 0, v, jnp.exp(jnp.minimum(v, 0.0)) - 1.0)


def mlp_kernel(x_ref, w_ref, b_ref, o_ref):
    """One batch tile through the whole MLP.

    x_ref: (tile_m, k0)  bf16, k0 = fan_in of layer 0 padded to 16 only (NOT 128)
    w_ref: (L, P, P)     bf16, all layers packed (fan_in, fan_out), zero-padded
    b_ref: (L, 1, P)     f32,  all biases packed, zero-padded
    o_ref: (tile_m, P)   bf16, lane-dense; wrapper slices the real dim_out columns
    """
    n_layers = w_ref.shape[0]
    k0 = x_ref.shape[1]                            # static padded fan_in of layer 0
    h = x_ref[...]
    for l in range(n_layers):                      # static unroll (5 layers)
        if l == 0:
            w = w_ref[0, :k0, :]                   # real fan_in only: K=16, not 128
        else:
            w = w_ref[l]
        z = jnp.dot(h, w, preferred_element_type=jnp.float32)
        z = z + b_ref[l]                           # (1, P) f32 broadcast
        if l < n_layers - 1:
            h = _elu_f32(z).astype(x_ref.dtype)    # activation in f32, bf16 into next MXU op
        else:
            h = z
    o_ref[...] = h.astype(o_ref.dtype)             # unmasked 128-lane bf16 store


class PackedMLP(NamedTuple):
    w_stack: jax.Array   # (L, P, P) bf16, (fan_in, fan_out) layout
    b_stack: jax.Array   # (L, 1, P) f32
    dim_in: int
    dim_out: int


def pack_params(params, compute_dtype=COMPUTE_DTYPE):
    """Pack all layers into two zero-padded device buffers.

    Call ONCE per parameter set and reuse across forward calls (hoisted out of
    the per-call path, per the perf review).
    """
    P = LANE
    for w, _ in params:
        P = max(P, _round_up(w.shape[0], LANE), _round_up(w.shape[1], LANE))
    L = len(params)
    w_np = np.zeros((L, P, P), np.float32)
    b_np = np.zeros((L, 1, P), np.float32)
    for l, (w, b) in enumerate(params):
        fi, fo = w.shape
        w_np[l, :fi, :fo] = np.asarray(w, np.float32)
        b_np[l, 0, :fo] = np.asarray(b, np.float32).reshape(-1)
    return PackedMLP(
        w_stack=jnp.asarray(w_np, compute_dtype),
        b_stack=jnp.asarray(b_np, jnp.float32),
        dim_in=int(params[0][0].shape[0]),
        dim_out=int(params[-1][0].shape[1]),
    )


@functools.partial(jax.jit, static_argnames=("dim_out", "tm"))
def _mlp_forward_impl(x, w_stack, b_stack, *, dim_out, tm):
    batch, dim_in = x.shape
    L, P, _ = w_stack.shape
    k0 = _round_up(dim_in, SUBLANE_BF16)

    # Batch tiling: round to a bf16 sublane multiple; when there is enough work,
    # keep the "parallel" grid axis >= 2 steps so v7x's two TensorCores both run.
    tile_m = _round_up(min(tm, _round_up(batch, SUBLANE_BF16)), SUBLANE_BF16)
    if _round_up(batch, SUBLANE_BF16) <= tile_m and batch >= 2 * SUBLANE_BF16:
        tile_m = _round_up((tile_m + 1) // 2, SUBLANE_BF16)
    pb = _round_up(batch, tile_m)

    # Pad rows to the tile and fan_in to 16 only (no 128-lane inflation of x:
    # the wrapper-side 128-wide copy was an entire extra HBM pass).
    x_c = x.astype(COMPUTE_DTYPE)
    if pb != batch or k0 != dim_in:
        x_pad = jnp.zeros((pb, k0), COMPUTE_DTYPE).at[:batch, :dim_in].set(x_c)
    else:
        x_pad = x_c

    out = pl.pallas_call(
        mlp_kernel,
        out_shape=jax.ShapeDtypeStruct((pb, P), COMPUTE_DTYPE),
        grid=(pb // tile_m,),
        in_specs=[
            pl.BlockSpec((tile_m, k0), lambda i: (i, 0)),    # streamed activations (narrow lanes)
            pl.BlockSpec((L, P, P), lambda i: (0, 0, 0)),    # weights: VMEM-resident, DMA'd once
            pl.BlockSpec((L, 1, P), lambda i: (0, 0, 0)),    # biases:  VMEM-resident, DMA'd once
        ],
        out_specs=pl.BlockSpec((tile_m, P), lambda i: (i, 0)),   # lane-dense bf16 writeback
        compiler_params=pltpu.CompilerParams(
            dimension_semantics=("parallel",),               # megacore-shardable batch axis
            vmem_limit_bytes=32 * 1024 * 1024,               # safe on v7x (64 MiB physical)
        ),
    )(x_pad, w_stack, b_stack)
    return out[:batch, :dim_out].astype(jnp.float32)


def mlp_forward(x, packed: PackedMLP, *, tm=1024):
    """Run the MLP on a (batch, dim_in) input; returns (batch, dim_out) f32."""
    return _mlp_forward_impl(x, packed.w_stack, packed.b_stack,
                             dim_out=packed.dim_out, tm=tm)


def init_mlp_params(key, dim_input, dim_hidden, dim_out, depth_hidden=3):
    """Deterministic init mimicking nn.Linear's U(-1/sqrt(fan_in), 1/sqrt(fan_in)).

    Weights are stored as (fan_in, fan_out) so the kernel computes y = x @ W + b
    (transpose of nn.Linear's (out, in) storage; identical forward semantics).
    """
    dims = [dim_input] + [dim_hidden] * (depth_hidden + 1) + [dim_out]
    params = []
    for i in range(len(dims) - 1):
        fan_in, fan_out = dims[i], dims[i + 1]
        key, kw, kb = jax.random.split(key, 3)
        bound = 1.0 / jnp.sqrt(float(fan_in))
        w = jax.random.uniform(kw, (fan_in, fan_out), jnp.float32, -bound, bound)
        b = jax.random.uniform(kb, (fan_out,), jnp.float32, -bound, bound)
        params.append((w, b))
    return params


def mlp_reference(x, params):
    h = x
    n = len(params)
    for i, (w, b) in enumerate(params):
        h = h @ w + b[None, :]
        if i != n - 1:
            h = jnp.where(h > 0, h, jnp.exp(jnp.minimum(h, 0.0)) - 1.0)
    return h


if __name__ == "__main__":
    batch, dim_input, dim_hidden, dim_out = 8, 16, 32, 4

    key = jax.random.PRNGKey(0)
    kx, kp = jax.random.split(key)
    x = jax.random.normal(kx, (batch, dim_input), jnp.float32)
    params = init_mlp_params(kp, dim_input, dim_hidden, dim_out, depth_hidden=3)

    packed = pack_params(params)          # one-time packing, reused across calls

    out = jax.block_until_ready(mlp_forward(x, packed))
    ref = mlp_reference(x, params)
    assert out.shape == (batch, dim_out)
    # bf16 MXU inputs + bf16 writeback vs pure-f32 reference -> loose tolerance.
    assert jnp.allclose(out, ref, atol=5e-2, rtol=5e-2), float(jnp.max(jnp.abs(out - ref)))

    # Exercise the multi-tile path (row padding + >= 2 grid steps for megacore).
    x2 = jax.random.normal(jax.random.PRNGKey(1), (48, dim_input), jnp.float32)
    out2 = jax.block_until_ready(mlp_forward(x2, packed))
    ref2 = mlp_reference(x2, params)
    assert out2.shape == (48, dim_out)
    assert jnp.allclose(out2, ref2, atol=5e-2, rtol=5e-2), float(jnp.max(jnp.abs(out2 - ref2)))

    print("KERNEL_OK")
</pallas_src>

<mosaic_0001>
module attributes {stable_mosaic.version = 11 : i64} {
  func.func @mlp_kernel(%arg0: i32, %arg1: memref<16x16xbf16, #tpu.memory_space<vmem>>, %arg2: memref<5x128x128xbf16, #tpu.memory_space<vmem>>, %arg3: memref<5x1x128xf32, #tpu.memory_space<vmem>>, %arg4: memref<16x128xbf16, #tpu.memory_space<vmem>>) attributes {dimension_semantics = [#tpu.dimension_semantics<parallel>], iteration_bounds = array<i64: 1>, scalar_prefetch = 0 : i64, scratch_operands = 0 : i64, tpu.core_type = #tpu.core_type<tc>, window_params = [{transform_indices = @transform_0, window_bounds = array<i64: 16, 16>}, {pipeline_mode = #tpu.pipeline_mode<synchronous>, transform_indices = @transform_1, window_bounds = array<i64: 5, 128, 128>}, {pipeline_mode = #tpu.pipeline_mode<synchronous>, transform_indices = @transform_2, window_bounds = array<i64: 5, 1, 128>}, {transform_indices = @transform_3, window_bounds = array<i64: 16, 128>}]} {
    %c0 = arith.constant 0 : index
    %c0_0 = arith.constant 0 : index
    %0 = vector.load %arg1[%c0, %c0_0] : memref<16x16xbf16, #tpu.memory_space<vmem>>, vector<16x16xbf16>
    %c0_1 = arith.constant 0 : index
    %c0_2 = arith.constant 0 : index
    %c0_3 = arith.constant 0 : index
    %1 = vector.load %arg2[%c0_1, %c0_2, %c0_3] : memref<5x128x128xbf16, #tpu.memory_space<vmem>>, vector<1x16x128xbf16>
    %2 = vector.shape_cast %1 : vector<1x16x128xbf16> to vector<16x128xbf16>
    %cst = arith.constant dense<0.000000e+00> : vector<16x128xf32>
    %3 = tpu.matmul %0, %2, %cst {dimension_numbers = #tpu.dot_dimension_numbers<[1], [0], [0], [1], [0, 0, 1, 1], [], []>} : vector<16x16xbf16>, vector<16x128xbf16>, vector<16x128xf32> -> vector<16x128xf32>
    %c0_4 = arith.constant 0 : index
    %c0_5 = arith.constant 0 : index
    %c0_6 = arith.constant 0 : index
    %4 = vector.load %arg3[%c0_4, %c0_5, %c0_6] : memref<5x1x128xf32, #tpu.memory_space<vmem>>, vector<1x1x128xf32>
    %5 = vector.shape_cast %4 : vector<1x1x128xf32> to vector<1x128xf32>
    %6 = vector.broadcast %5 : vector<1x128xf32> to vector<16x128xf32>
    %7 = arith.addf %3, %6 : vector<16x128xf32>
    %cst_7 = arith.constant 0.000000e+00 : f32
    %8 = vector.broadcast %cst_7 : f32 to vector<16x128xf32>
    %9 = arith.cmpf ogt, %7, %8 : vector<16x128xf32>
    %cst_8 = arith.constant 0.000000e+00 : f32
    %10 = vector.broadcast %cst_8 : f32 to vector<16x128xf32>
    %11 = arith.minimumf %7, %10 : vector<16x128xf32>
    %12 = math.exp %11 : vector<16x128xf32>
    %cst_9 = arith.constant 1.000000e+00 : f32
    %13 = vector.broadcast %cst_9 : f32 to vector<16x128xf32>
    %14 = arith.subf %12, %13 : vector<16x128xf32>
    %15 = arith.select %9, %7, %14 : vector<16x128xi1>, vector<16x128xf32>
    %16 = arith.truncf %15 : vector<16x128xf32> to vector<16x128xbf16>
    %c1 = arith.constant 1 : index
    %c0_10 = arith.constant 0 : index
    %c0_11 = arith.constant 0 : index
    %17 = vector.load %arg2[%c1, %c0_10, %c0_11] : memref<5x128x128xbf16, #tpu.memory_space<vmem>>, vector<1x128x128xbf16>
    %18 = vector.shape_cast %17 : vector<1x128x128xbf16> to vector<128x128xbf16>
    %cst_12 = arith.constant dense<0.000000e+00> : vector<16x128xf32>
    %19 = tpu.matmul %16, %18, %cst_12 {dimension_numbers = #tpu.dot_dimension_numbers<[1], [0], [0], [1], [0, 0, 1, 1], [], []>} : vector<16x128xbf16>, vector<128x128xbf16>, vector<16x128xf32> -> vector<16x128xf32>
    %c1_13 = arith.constant 1 : index
    %c0_14 = arith.constant 0 : index
    %c0_15 = arith.constant 0 : index
    %20 = vector.load %arg3[%c1_13, %c0_14, %c0_15] : memref<5x1x128xf32, #tpu.memory_space<vmem>>, vector<1x1x128xf32>
    %21 = vector.shape_cast %20 : vector<1x1x128xf32> to vector<1x128xf32>
    %22 = vector.broadcast %21 : vector<1x128xf32> to vector<16x128xf32>
    %23 = arith.addf %19, %22 : vector<16x128xf32>
    %cst_16 = arith.constant 0.000000e+00 : f32
    %24 = vector.broadcast %cst_16 : f32 to vector<16x128xf32>
    %25 = arith.cmpf ogt, %23, %24 : vector<16x128xf32>
    %cst_17 = arith.constant 0.000000e+00 : f32
    %26 = vector.broadcast %cst_17 : f32 to vector<16x128xf32>
    %27 = arith.minimumf %23, %26 : vector<16x128xf32>
    %28 = math.exp %27 : vector<16x128xf32>
    %cst_18 = arith.constant 1.000000e+00 : f32
    %29 = vector.broadcast %cst_18 : f32 to vector<16x128xf32>
    %30 = arith.subf %28, %29 : vector<16x128xf32>
    %31 = arith.select %25, %23, %30 : vector<16x128xi1>, vector<16x128xf32>
    %32 = arith.truncf %31 : vector<16x128xf32> to vector<16x128xbf16>
    %c2 = arith.constant 2 : index
    %c0_19 = arith.constant 0 : index
    %c0_20 = arith.constant 0 : index
    %33 = vector.load %arg2[%c2, %c0_19, %c0_20] : memref<5x128x128xbf16, #tpu.memory_space<vmem>>, vector<1x128x128xbf16>
    %34 = vector.shape_cast %33 : vector<1x128x128xbf16> to vector<128x128xbf16>
    %cst_21 = arith.constant dense<0.000000e+00> : vector<16x128xf32>
    %35 = tpu.matmul %32, %34, %cst_21 {dimension_numbers = #tpu.dot_dimension_numbers<[1], [0], [0], [1], [0, 0, 1, 1], [], []>} : vector<16x128xbf16>, vector<128x128xbf16>, vector<16x128xf32> -> vector<16x128xf32>
    %c2_22 = arith.constant 2 : index
    %c0_23 = arith.constant 0 : index
    %c0_24 = arith.constant 0 : index
    %36 = vector.load %arg3[%c2_22, %c0_23, %c0_24] : memref<5x1x128xf32, #tpu.memory_space<vmem>>, vector<1x1x128xf32>
    %37 = vector.shape_cast %36 : vector<1x1x128xf32> to vector<1x128xf32>
    %38 = vector.broadcast %37 : vector<1x128xf32> to vector<16x128xf32>
    %39 = arith.addf %35, %38 : vector<16x128xf32>
    %cst_25 = arith.constant 0.000000e+00 : f32
    %40 = vector.broadcast %cst_25 : f32 to vector<16x128xf32>
    %41 = arith.cmpf ogt, %39, %40 : vector<16x128xf32>
    %cst_26 = arith.constant 0.000000e+00 : f32
    %42 = vector.broadcast %cst_26 : f32 to vector<16x128xf32>
    %43 = arith.minimumf %39, %42 : vector<16x128xf32>
    %44 = math.exp %43 : vector<16x128xf32>
    %cst_27 = arith.constant 1.000000e+00 : f32
    %45 = vector.broadcast %cst_27 : f32 to vector<16x128xf32>
    %46 = arith.subf %44, %45 : vector<16x128xf32>
    %47 = arith.select %41, %39, %46 : vector<16x128xi1>, vector<16x128xf32>
    %48 = arith.truncf %47 : vector<16x128xf32> to vector<16x128xbf16>
    %c3 = arith.constant 3 : index
    %c0_28 = arith.constant 0 : index
    %c0_29 = arith.constant 0 : index
    %49 = vector.load %arg2[%c3, %c0_28, %c0_29] : memref<5x128x128xbf16, #tpu.memory_space<vmem>>, vector<1x128x128xbf16>
    %50 = vector.shape_cast %49 : vector<1x128x128xbf16> to vector<128x128xbf16>
    %cst_30 = arith.constant dense<0.000000e+00> : vector<16x128xf32>
    %51 = tpu.matmul %48, %50, %cst_30 {dimension_numbers = #tpu.dot_dimension_numbers<[1], [0], [0], [1], [0, 0, 1, 1], [], []>} : vector<16x128xbf16>, vector<128x128xbf16>, vector<16x128xf32> -> vector<16x128xf32>
    %c3_31 = arith.constant 3 : index
    %c0_32 = arith.constant 0 : index
    %c0_33 = arith.constant 0 : index
    %52 = vector.load %arg3[%c3_31, %c0_32, %c0_33] : memref<5x1x128xf32, #tpu.memory_space<vmem>>, vector<1x1x128xf32>
    %53 = vector.shape_cast %52 : vector<1x1x128xf32> to vector<1x128xf32>
    %54 = vector.broadcast %53 : vector<1x128xf32> to vector<16x128xf32>
    %55 = arith.addf %51, %54 : vector<16x128xf32>
    %cst_34 = arith.constant 0.000000e+00 : f32
    %56 = vector.broadcast %cst_34 : f32 to vector<16x128xf32>
    %57 = arith.cmpf ogt, %55, %56 : vector<16x128xf32>
    %cst_35 = arith.constant 0.000000e+00 : f32
    %58 = vector.broadcast %cst_35 : f32 to vector<16x128xf32>
    %59 = arith.minimumf %55, %58 : vector<16x128xf32>
    %60 = math.exp %59 : vector<16x128xf32>
    %cst_36 = arith.constant 1.000000e+00 : f32
    %61 = vector.broadcast %cst_36 : f32 to vector<16x128xf32>
    %62 = arith.subf %60, %61 : vector<16x128xf32>
    %63 = arith.select %57, %55, %62 : vector<16x128xi1>, vector<16x128xf32>
    %64 = arith.truncf %63 : vector<16x128xf32> to vector<16x128xbf16>
    %c4 = arith.constant 4 : index
    %c0_37 = arith.constant 0 : index
    %c0_38 = arith.constant 0 : index
    %65 = vector.load %arg2[%c4, %c0_37, %c0_38] : memref<5x128x128xbf16, #tpu.memory_space<vmem>>, vector<1x128x128xbf16>
    %66 = vector.shape_cast %65 : vector<1x128x128xbf16> to vector<128x128xbf16>
    %cst_39 = arith.constant dense<0.000000e+00> : vector<16x128xf32>
    %67 = tpu.matmul %64, %66, %cst_39 {dimension_numbers = #tpu.dot_dimension_numbers<[1], [0], [0], [1], [0, 0, 1, 1], [], []>} : vector<16x128xbf16>, vector<128x128xbf16>, vector<16x128xf32> -> vector<16x128xf32>
    %c4_40 = arith.constant 4 : index
    %c0_41 = arith.constant 0 : index
    %c0_42 = arith.constant 0 : index
    %68 = vector.load %arg3[%c4_40, %c0_41, %c0_42] : memref<5x1x128xf32, #tpu.memory_space<vmem>>, vector<1x1x128xf32>
    %69 = vector.shape_cast %68 : vector<1x1x128xf32> to vector<1x128xf32>
    %70 = vector.broadcast %69 : vector<1x128xf32> to vector<16x128xf32>
    %71 = arith.addf %67, %70 : vector<16x128xf32>
    %72 = arith.truncf %71 : vector<16x128xf32> to vector<16x128xbf16>
    %c0_43 = arith.constant 0 : index
    %c0_44 = arith.constant 0 : index
    %73 = vector.load %arg4[%c0_43, %c0_44] : memref<16x128xbf16, #tpu.memory_space<vmem>>, vector<16x128xbf16>
    tpu.vector_store %arg4[%c0_43, %c0_44], %72 {strides = array<i32>} : memref<16x128xbf16, #tpu.memory_space<vmem>>, vector<16x128xbf16>,
    return
  }
  func.func @transform_0(%arg0: i32) -> (i32, i32) {
    %c0_i32 = arith.constant 0 : i32
    %c0_i32_0 = arith.constant 0 : i32
    return %arg0, %c0_i32 : i32, i32
  }
  func.func @transform_1(%arg0: i32) -> (i32, i32, i32) {
    %c0_i32 = arith.constant 0 : i32
    %c0_i32_0 = arith.constant 0 : i32
    %c0_i32_1 = arith.constant 0 : i32
    %c0_i32_2 = arith.constant 0 : i32
    return %c0_i32, %c0_i32_0, %c0_i32_1 : i32, i32, i32
  }
  func.func @transform_2(%arg0: i32) -> (i32, i32, i32) {
    %c0_i32 = arith.constant 0 : i32
    %c0_i32_0 = arith.constant 0 : i32
    %c0_i32_1 = arith.constant 0 : i32
    %c0_i32_2 = arith.constant 0 : i32
    return %c0_i32, %c0_i32_0, %c0_i32_1 : i32, i32, i32
  }
  func.func @transform_3(%arg0: i32) -> (i32, i32) {
    %c0_i32 = arith.constant 0 : i32
    %c0_i32_0 = arith.constant 0 : i32
    return %arg0, %c0_i32 : i32, i32
  }
}

</mosaic_0001>

<llo_original>
// kernel: _mlp_forward_impl.1
$region0: #{_mlp_forward_impl.1}
  #allocation0 [shape = 'u32[]', space=smem, size = 0x4, offset = 0x4, fixed_abs, tag = 'smem constant byte address 0x4 - core index']
  #allocation1 [shape = 'u32[72,128]{1,0:T(1,128)}', space=vmem, size = 0x9000, scoped, tag = 'internal scratch']
  %s0 = inlined_call_operand.vmem [shape: bf16[16,16], index: 0, kind: input, shape index: {}]
  %s1 = inlined_call_operand.hbm [shape: bf16[5,128,128], index: 1, kind: input, shape index: {}]
  %s2 = inlined_call_operand.vmem [shape: f32[5,1,128], index: 2, kind: input, shape index: {}]
  %s3 = inlined_call_operand.vmem [shape: bf16[16,128], index: 3, kind: output, shape index: {}]
  %s4 = sld [smem:[#allocation0]]
  $region26: #{_mlp_forward_impl.1} parent=0
    _
  %s6 = ssub.s32 1, %s4
  %s7 = scalar_select 0, %s6, %s4
  $region1: #{_mlp_forward_impl.1} parent=0
    #allocation2 [shape = 'u8[163840]{0}', space=vmem, size = 0x28000, scoped, tag = 'input window, operand 1, single buffered']
    #allocation3 [shape = 's32[1]{0}', space=sflag, size = 0x4, scoped, tag = 'scoped memory for _mlp_forward_impl.1']
    %8 = vsyncpa [#allocation3], 0
    // Predicated region
    $region2: #{_mlp_forward_impl.1} parent=1 // pred_check
      _
    $region3: #{_mlp_forward_impl.1} parent=1 // pred_check_branch
      %10 = sbr.rel (0) target = $region5
    $region4: #{_mlp_forward_impl.1} parent=1 // pred_region
      _
    $region5: #{_mlp_forward_impl.1} parent=1 // pred_fallthru
      _
    // Predicated region
    $region6: #{_mlp_forward_impl.1} parent=1 // pred_check
      _
    $region7: #{_mlp_forward_impl.1} parent=1 // pred_check_branch
      %12 = sbr.rel (0) target = $region9
    $region8: #{_mlp_forward_impl.1} parent=1 // pred_region
      %14 = vsyncadd [#allocation3], 0
      %s15 = sshll.u32 %s1, 4
      %s16 = int_to_ptr.hbm [resolvable:$true] %s15
      %s17 = sshll.u32 [#allocation2], 4
      %s18 = int_to_ptr.vmem [resolvable:$true] %s17
      %23 = dma.hbm_to_vmem [thread:$0]  %s16, 5120, %s18, [#allocation3], 64, 64, 4
    $region9: #{_mlp_forward_impl.1} parent=1 // pred_fallthru
      _
    // Predicated region
    $region10: #{_mlp_forward_impl.1} parent=1 // pred_check
      _
    $region11: #{_mlp_forward_impl.1} parent=1 // pred_check_branch
      %25 = sbr.rel (0) target = $region13
    $region12: #{_mlp_forward_impl.1} parent=1 // pred_region
      _
    $region13: #{_mlp_forward_impl.1} parent=1 // pred_fallthru
      _
    // Predicated region
    $region14: #{_mlp_forward_impl.1} parent=1 // pred_check
      _
    $region15: #{_mlp_forward_impl.1} parent=1 // pred_check_branch
      %27 = sbr.rel (0) target = $region17
    $region16: #{_mlp_forward_impl.1} parent=1 // pred_region
      %29 = dma.done [#allocation3], 5120
    $region17: #{_mlp_forward_impl.1} parent=1 // pred_fallthru
      _
    %v31 = vld [vmem:[%s0] sm:$0xf]
    %v32 = vld [vmem:[%s0 + $0x4] sm:$0xf]
    %v33 = vld [vmem:[#allocation2] sm:$0xf]
    %v34 = vld [vmem:[#allocation2 + $0x4] sm:$0xf]
    %v35 = vld [vmem:[%s2] sm:$0x1]
    %v37 = vperm.slane %v35, 0
    %v41 = vunpack.c.l.b16 %v31
    %v42 = vunpack.c.l.b16 %v32
    %v43 = vpack.c.b16 %v42, %v41
    %v46 = vunpack.c.l.b16 %v33
    %v47 = vunpack.c.l.b16 %v34
    %v48 = vpack.c.b16 %v47, %v46
    %vm50 = vcmask 130048
    %v52 = vsel %vm50, %v43, 0
    %54 = vmatpush.bf16.msra.mxu0 0
    %55 = vmatpush.bf16.msra.mxu0 0
    %56 = vmatpush.bf16.msra.mxu0 0
    %57 = vmatpush.bf16.msra.mxu0 0
    %58 = vmatpush.bf16.msra.mxu0 0
    %59 = vmatpush.bf16.msra.mxu0 0
    %60 = vmatpush.bf16.msra.mxu0 0
    %61 = vmatpush.bf16.msra.mxu0 %v48
    %62 = vmatmul.bf16.gmra.mxu0 %v52
    %v63 = vpop.f32.mrf.mxu0
    %v64 = vadd.f32 %v37, %v63
    %v65 = vpop.f32.mrf.mxu0
    %v66 = vadd.f32 %v37, %v65
    %67 = vdwg.mxu0
    %vm68 = vcmp.gt.f32.partialorder %v64, 0.0
    %vm69 = vcmp.gt.f32.partialorder %v66, 0.0
    %v70 = vmin.f32 %v64, 0.0
    %v71 = vmin.f32 %v66, 0.0
    %v72 = vmul.f32 %v70, 1.442695
    %v73 = vpow.pop %v72
    %v74 = vmul.f32 %v71, 1.442695
    %v75 = vpow.pop %v74
    %v76 = vsub.f32 %v73, 1.0
    %v77 = vsub.f32 %v75, 1.0
    %v78 = vsel %vm68, %v64, %v76
    %v79 = vsel %vm69, %v66, %v77
    %v80 = vpack.c.bf16 %v79, %v78
    %s81 = scalar_lea.vmem [#allocation2], 64
    %v82 = vld [vmem:[%s81] sm:$0xf]
    %v83 = vld [vmem:[%s81 + $0x4] sm:$0xf]
    %v84 = vld [vmem:[%s81 + $0x8] sm:$0xf]
    %v85 = vld [vmem:[%s81 + $0xc] sm:$0xf]
    %v86 = vld [vmem:[%s81 + $0x10] sm:$0xf]
    %v87 = vld [vmem:[%s81 + $0x14] sm:$0xf]
    %v88 = vld [vmem:[%s81 + $0x18] sm:$0xf]
    %v89 = vld [vmem:[%s81 + $0x1c] sm:$0xf]
    %v90 = vld [vmem:[%s81 + $0x20] sm:$0xf]
    %v91 = vld [vmem:[%s81 + $0x24] sm:$0xf]
    %v92 = vld [vmem:[%s81 + $0x28] sm:$0xf]
    %v93 = vld [vmem:[%s81 + $0x2c] sm:$0xf]
    %v94 = vld [vmem:[%s81 + $0x30] sm:$0xf]
    %v95 = vld [vmem:[%s81 + $0x34] sm:$0xf]
    %v96 = vld [vmem:[%s81 + $0x38] sm:$0xf]
    %v97 = vld [vmem:[%s81 + $0x3c] sm:$0xf]
    %s98 = scalar_lea.vmem %s2, 1
    %v99 = vld [vmem:[%s98] sm:$0x1]
    %v101 = vperm.slane %v99, 0
    %v119 = vunpack.c.l.b16 %v82
    %v120 = vunpack.c.l.b16 %v83
    %v121 = vunpack.c.l.b16 %v84
    %v122 = vunpack.c.l.b16 %v85
    %v123 = vunpack.c.l.b16 %v86
    %v124 = vunpack.c.l.b16 %v87
    %v125 = vunpack.c.l.b16 %v88
    %v126 = vunpack.c.l.b16 %v89
    %v127 = vunpack.c.l.b16 %v90
    %v128 = vunpack.c.l.b16 %v91
    %v129 = vunpack.c.l.b16 %v92
    %v130 = vunpack.c.l.b16 %v93
    %v131 = vunpack.c.l.b16 %v94
    %v132 = vunpack.c.l.b16 %v95
    %v133 = vunpack.c.l.b16 %v96
    %v134 = vunpack.c.l.b16 %v97
    %v135 = vpack.c.b16 %v120, %v119
    %v136 = vpack.c.b16 %v122, %v121
    %v137 = vpack.c.b16 %v124, %v123
    %v138 = vpack.c.b16 %v126, %v125
    %v139 = vpack.c.b16 %v128, %v127
    %v140 = vpack.c.b16 %v130, %v129
    %v141 = vpack.c.b16 %v132, %v131
    %v142 = vpack.c.b16 %v134, %v133
    %151 = vmatpush.bf16.msra.mxu0 %v142
    %152 = vmatpush.bf16.msra.mxu0 %v141
    %153 = vmatpush.bf16.msra.mxu0 %v140
    %154 = vmatpush.bf16.msra.mxu0 %v139
    %155 = vmatpush.bf16.msra.mxu0 %v138
    %156 = vmatpush.bf16.msra.mxu0 %v137
    %157 = vmatpush.bf16.msra.mxu0 %v136
    %158 = vmatpush.bf16.msra.mxu0 %v135
    %159 = vmatmul.bf16.gmra.mxu0 %v80
    %v160 = vpop.f32.mrf.mxu0
    %v161 = vadd.f32 %v101, %v160
    %v162 = vpop.f32.mrf.mxu0
    %v163 = vadd.f32 %v101, %v162
    %164 = vdwg.mxu0
    %vm165 = vcmp.gt.f32.partialorder %v161, 0.0
    %vm166 = vcmp.gt.f32.partialorder %v163, 0.0
    %v167 = vmin.f32 %v161, 0.0
    %v168 = vmin.f32 %v163, 0.0
    %v169 = vmul.f32 %v167, 1.442695
    %v170 = vpow.pop %v169
    %v171 = vmul.f32 %v168, 1.442695
    %v172 = vpow.pop %v171
    %v173 = vsub.f32 %v170, 1.0
    %v174 = vsub.f32 %v172, 1.0
    %v175 = vsel %vm165, %v161, %v173
    %v176 = vsel %vm166, %v163, %v174
    %v177 = vpack.c.bf16 %v176, %v175
    %s178 = scalar_lea.vmem [#allocation2], 128
    %v179 = vld [vmem:[%s178] sm:$0xf]
    %v180 = vld [vmem:[%s178 + $0x4] sm:$0xf]
    %v181 = vld [vmem:[%s178 + $0x8] sm:$0xf]
    %v182 = vld [vmem:[%s178 + $0xc] sm:$0xf]
    %v183 = vld [vmem:[%s178 + $0x10] sm:$0xf]
    %v184 = vld [vmem:[%s178 + $0x14] sm:$0xf]
    %v185 = vld [vmem:[%s178 + $0x18] sm:$0xf]
    %v186 = vld [vmem:[%s178 + $0x1c] sm:$0xf]
    %v187 = vld [vmem:[%s178 + $0x20] sm:$0xf]
    %v188 = vld [vmem:[%s178 + $0x24] sm:$0xf]
    %v189 = vld [vmem:[%s178 + $0x28] sm:$0xf]
    %v190 = vld [vmem:[%s178 + $0x2c] sm:$0xf]
    %v191 = vld [vmem:[%s178 + $0x30] sm:$0xf]
    %v192 = vld [vmem:[%s178 + $0x34] sm:$0xf]
    %v193 = vld [vmem:[%s178 + $0x38] sm:$0xf]
    %v194 = vld [vmem:[%s178 + $0x3c] sm:$0xf]
    %s195 = scalar_lea.vmem %s2, 2
    %v196 = vld [vmem:[%s195] sm:$0x1]
    %v198 = vperm.slane %v196, 0
    %v216 = vunpack.c.l.b16 %v179
    %v217 = vunpack.c.l.b16 %v180
    %v218 = vunpack.c.l.b16 %v181
    %v219 = vunpack.c.l.b16 %v182
    %v220 = vunpack.c.l.b16 %v183
    %v221 = vunpack.c.l.b16 %v184
    %v222 = vunpack.c.l.b16 %v185
    %v223 = vunpack.c.l.b16 %v186
    %v224 = vunpack.c.l.b16 %v187
    %v225 = vunpack.c.l.b16 %v188
    %v226 = vunpack.c.l.b16 %v189
    %v227 = vunpack.c.l.b16 %v190
    %v228 = vunpack.c.l.b16 %v191
    %v229 = vunpack.c.l.b16 %v192
    %v230 = vunpack.c.l.b16 %v193
    %v231 = vunpack.c.l.b16 %v194
    %v232 = vpack.c.b16 %v217, %v216
    %v233 = vpack.c.b16 %v219, %v218
    %v234 = vpack.c.b16 %v221, %v220
    %v235 = vpack.c.b16 %v223, %v222
    %v236 = vpack.c.b16 %v225, %v224
    %v237 = vpack.c.b16 %v227, %v226
    %v238 = vpack.c.b16 %v229, %v228
    %v239 = vpack.c.b16 %v231, %v230
    %248 = vmatpush.bf16.msra.mxu0 %v239
    %249 = vmatpush.bf16.msra.mxu0 %v238
    %250 = vmatpush.bf16.msra.mxu0 %v237
    %251 = vmatpush.bf16.msra.mxu0 %v236
    %252 = vmatpush.bf16.msra.mxu0 %v235
    %253 = vmatpush.bf16.msra.mxu0 %v234
    %254 = vmatpush.bf16.msra.mxu0 %v233
    %255 = vmatpush.bf16.msra.mxu0 %v232
    %256 = vmatmul.bf16.gmra.mxu0 %v177
    %v257 = vpop.f32.mrf.mxu0
    %v258 = vadd.f32 %v198, %v257
    %v259 = vpop.f32.mrf.mxu0
    %v260 = vadd.f32 %v198, %v259
    %261 = vdwg.mxu0
    %vm262 = vcmp.gt.f32.partialorder %v258, 0.0
    %vm263 = vcmp.gt.f32.partialorder %v260, 0.0
    %v264 = vmin.f32 %v258, 0.0
    %v265 = vmin.f32 %v260, 0.0
    %v266 = vmul.f32 %v264, 1.442695
    %v267 = vpow.pop %v266
    %v268 = vmul.f32 %v265, 1.442695
    %v269 = vpow.pop %v268
    %v270 = vsub.f32 %v267, 1.0
    %v271 = vsub.f32 %v269, 1.0
    %v272 = vsel %vm262, %v258, %v270
    %v273 = vsel %vm263, %v260, %v271
    %v274 = vpack.c.bf16 %v273, %v272
    %s275 = scalar_lea.vmem [#allocation2], 192
    %v276 = vld [vmem:[%s275] sm:$0xf]
    %v277 = vld [vmem:[%s275 + $0x4] sm:$0xf]
    %v278 = vld [vmem:[%s275 + $0x8] sm:$0xf]
    %v279 = vld [vmem:[%s275 + $0xc] sm:$0xf]
    %v280 = vld [vmem:[%s275 + $0x10] sm:$0xf]
    %v281 = vld [vmem:[%s275 + $0x14] sm:$0xf]
    %v282 = vld [vmem:[%s275 + $0x18] sm:$0xf]
    %v283 = vld [vmem:[%s275 + $0x1c] sm:$0xf]
    %v284 = vld [vmem:[%s275 + $0x20] sm:$0xf]
    %v285 = vld [vmem:[%s275 + $0x24] sm:$0xf]
    %v286 = vld [vmem:[%s275 + $0x28] sm:$0xf]
    %v287 = vld [vmem:[%s275 + $0x2c] sm:$0xf]
    %v288 = vld [vmem:[%s275 + $0x30] sm:$0xf]
    %v289 = vld [vmem:[%s275 + $0x34] sm:$0xf]
    %v290 = vld [vmem:[%s275 + $0x38] sm:$0xf]
    %v291 = vld [vmem:[%s275 + $0x3c] sm:$0xf]
    %s292 = scalar_lea.vmem %s2, 3
    %v293 = vld [vmem:[%s292] sm:$0x1]
    %v295 = vperm.slane %v293, 0
    %v313 = vunpack.c.l.b16 %v276
    %v314 = vunpack.c.l.b16 %v277
    %v315 = vunpack.c.l.b16 %v278
    %v316 = vunpack.c.l.b16 %v279
    %v317 = vunpack.c.l.b16 %v280
    %v318 = vunpack.c.l.b16 %v281
    %v319 = vunpack.c.l.b16 %v282
    %v320 = vunpack.c.l.b16 %v283
    %v321 = vunpack.c.l.b16 %v284
    %v322 = vunpack.c.l.b16 %v285
    %v323 = vunpack.c.l.b16 %v286
    %v324 = vunpack.c.l.b16 %v287
    %v325 = vunpack.c.l.b16 %v288
    %v326 = vunpack.c.l.b16 %v289
    %v327 = vunpack.c.l.b16 %v290
    %v328 = vunpack.c.l.b16 %v291
    %v329 = vpack.c.b16 %v314, %v313
    %v330 = vpack.c.b16 %v316, %v315
    %v331 = vpack.c.b16 %v318, %v317
    %v332 = vpack.c.b16 %v320, %v319
    %v333 = vpack.c.b16 %v322, %v321
    %v334 = vpack.c.b16 %v324, %v323
    %v335 = vpack.c.b16 %v326, %v325
    %v336 = vpack.c.b16 %v328, %v327
    %345 = vmatpush.bf16.msra.mxu0 %v336
    %346 = vmatpush.bf16.msra.mxu0 %v335
    %347 = vmatpush.bf16.msra.mxu0 %v334
    %348 = vmatpush.bf16.msra.mxu0 %v333
    %349 = vmatpush.bf16.msra.mxu0 %v332
    %350 = vmatpush.bf16.msra.mxu0 %v331
    %351 = vmatpush.bf16.msra.mxu0 %v330
    %352 = vmatpush.bf16.msra.mxu0 %v329
    %353 = vmatmul.bf16.gmra.mxu0 %v274
    %v354 = vpop.f32.mrf.mxu0
    %v355 = vadd.f32 %v295, %v354
    %v356 = vpop.f32.mrf.mxu0
    %v357 = vadd.f32 %v295, %v356
    %358 = vdwg.mxu0
    %vm359 = vcmp.gt.f32.partialorder %v355, 0.0
    %vm360 = vcmp.gt.f32.partialorder %v357, 0.0
    %v361 = vmin.f32 %v355, 0.0
    %v362 = vmin.f32 %v357, 0.0
    %v363 = vmul.f32 %v361, 1.442695
    %v364 = vpow.pop %v363
    %v365 = vmul.f32 %v362, 1.442695
    %v366 = vpow.pop %v365
    %v367 = vsub.f32 %v364, 1.0
    %v368 = vsub.f32 %v366, 1.0
    %v369 = vsel %vm359, %v355, %v367
    %v370 = vsel %vm360, %v357, %v368
    %v371 = vpack.c.bf16 %v370, %v369
    %s372 = scalar_lea.vmem [#allocation2], 256
    %v373 = vld [vmem:[%s372] sm:$0xf]
    %v374 = vld [vmem:[%s372 + $0x4] sm:$0xf]
    %v375 = vld [vmem:[%s372 + $0x8] sm:$0xf]
    %v376 = vld [vmem:[%s372 + $0xc] sm:$0xf]
    %v377 = vld [vmem:[%s372 + $0x10] sm:$0xf]
    %v378 = vld [vmem:[%s372 + $0x14] sm:$0xf]
    %v379 = vld [vmem:[%s372 + $0x18] sm:$0xf]
    %v380 = vld [vmem:[%s372 + $0x1c] sm:$0xf]
    %v381 = vld [vmem:[%s372 + $0x20] sm:$0xf]
    %v382 = vld [vmem:[%s372 + $0x24] sm:$0xf]
    %v383 = vld [vmem:[%s372 + $0x28] sm:$0xf]
    %v384 = vld [vmem:[%s372 + $0x2c] sm:$0xf]
    %v385 = vld [vmem:[%s372 + $0x30] sm:$0xf]
    %v386 = vld [vmem:[%s372 + $0x34] sm:$0xf]
    %v387 = vld [vmem:[%s372 + $0x38] sm:$0xf]
    %v388 = vld [vmem:[%s372 + $0x3c] sm:$0xf]
    %s389 = scalar_lea.vmem %s2, 4
    %v390 = vld [vmem:[%s389] sm:$0x1]
    %v392 = vperm.slane %v390, 0
    %v410 = vunpack.c.l.b16 %v373
    %v411 = vunpack.c.l.b16 %v374
    %v412 = vunpack.c.l.b16 %v375
    %v413 = vunpack.c.l.b16 %v376
    %v414 = vunpack.c.l.b16 %v377
    %v415 = vunpack.c.l.b16 %v378
    %v416 = vunpack.c.l.b16 %v379
    %v417 = vunpack.c.l.b16 %v380
    %v418 = vunpack.c.l.b16 %v381
    %v419 = vunpack.c.l.b16 %v382
    %v420 = vunpack.c.l.b16 %v383
    %v421 = vunpack.c.l.b16 %v384
    %v422 = vunpack.c.l.b16 %v385
    %v423 = vunpack.c.l.b16 %v386
    %v424 = vunpack.c.l.b16 %v387
    %v425 = vunpack.c.l.b16 %v388
    %v426 = vpack.c.b16 %v411, %v410
    %v427 = vpack.c.b16 %v413, %v412
    %v428 = vpack.c.b16 %v415, %v414
    %v429 = vpack.c.b16 %v417, %v416
    %v430 = vpack.c.b16 %v419, %v418
    %v431 = vpack.c.b16 %v421, %v420
    %v432 = vpack.c.b16 %v423, %v422
    %v433 = vpack.c.b16 %v425, %v424
    %442 = vmatpush.bf16.msra.mxu0 %v433
    %443 = vmatpush.bf16.msra.mxu0 %v432
    %444 = vmatpush.bf16.msra.mxu0 %v431
    %445 = vmatpush.bf16.msra.mxu0 %v430
    %446 = vmatpush.bf16.msra.mxu0 %v429
    %447 = vmatpush.bf16.msra.mxu0 %v428
    %448 = vmatpush.bf16.msra.mxu0 %v427
    %449 = vmatpush.bf16.msra.mxu0 %v426
    %450 = vmatmul.bf16.gmra.mxu0 %v371
    %v451 = vpop.f32.mrf.mxu0
    %v452 = vadd.f32 %v392, %v451
    %v453 = vpop.f32.mrf.mxu0
    %v454 = vadd.f32 %v392, %v453
    %455 = vdwg.mxu0
    %v456 = vpack.c.bf16 %v452, %v452
    %v457 = vpack.c.bf16 %v454, %v454
    %458 = vst [vmem:[%s3] sm:$0xf] %v456
    %459 = vst [vmem:[%s3 + $0x4] sm:$0xf] %v457
    // Predicated region
    $region18: #{_mlp_forward_impl.1} parent=1 // pred_check
      _
    $region19: #{_mlp_forward_impl.1} parent=1 // pred_check_branch
      %461 = sbr.rel (0) target = $region21
    $region20: #{_mlp_forward_impl.1} parent=1 // pred_region
      _
    $region21: #{_mlp_forward_impl.1} parent=1 // pred_fallthru
      _
    // Predicated region
    $region22: #{_mlp_forward_impl.1} parent=1 // pred_check
      _
    $region23: #{_mlp_forward_impl.1} parent=1 // pred_check_branch
      %463 = sbr.rel (0) target = $region25
    $region24: #{_mlp_forward_impl.1} parent=1 // pred_region
      _
    $region25: #{_mlp_forward_impl.1} parent=1 // pred_fallthru
      _
    %464 = vsyncpa [#allocation3], 1

</llo_original>
